<compile_context>
chip_gen: v7x
topology: tpu7x:2x2x1
jax: 0.10.0
libtpu: 0.0.40
codegen_flags: <defaults>
</compile_context>

<pallas_src>
import functools

import jax
import jax.numpy as jnp
from jax.experimental import pallas as pl
from jax.experimental.pallas import tpu as pltpu


# ---------------------------------------------------------------------------
# Phase 1: pooling kernel (sum / max over the spatial lane axis)
# ---------------------------------------------------------------------------
def _pool_kernel(x_ref, xr_ref,                       # (C, HW_TILE)
                 sx_ref, sr_ref, mx_ref, mr_ref,      # (C, 1) accumulators
                 *, hw_tile, true_hw, need_mask):
    t = pl.program_id(1)

    @pl.when(t == 0)
    def _init():
        sx_ref[...] = jnp.zeros_like(sx_ref)
        sr_ref[...] = jnp.zeros_like(sr_ref)
        mx_ref[...] = jnp.full_like(mx_ref, -jnp.inf)
        mr_ref[...] = jnp.full_like(mr_ref, -jnp.inf)

    x = x_ref[...].astype(jnp.float32)
    xr = xr_ref[...].astype(jnp.float32)

    # Zero padding contributes nothing to the sum (mean divides by true HW).
    sx_ref[...] += jnp.sum(x, axis=-1, keepdims=True)
    sr_ref[...] += jnp.sum(xr, axis=-1, keepdims=True)

    if need_mask:
        # Mask padded lanes to -inf so they never win the max.
        lane = jax.lax.broadcasted_iota(jnp.int32, x.shape, 1)
        valid = (t * hw_tile + lane) < true_hw
        x = jnp.where(valid, x, -jnp.inf)
        xr = jnp.where(valid, xr, -jnp.inf)

    mx_ref[...] = jnp.maximum(mx_ref[...], jnp.max(x, axis=-1, keepdims=True))
    mr_ref[...] = jnp.maximum(mr_ref[...], jnp.max(xr, axis=-1, keepdims=True))


# ---------------------------------------------------------------------------
# Phase 2: streaming elementwise kernel
# ---------------------------------------------------------------------------
def _apply_kernel(x_ref, xr_ref, wf_ref,   # (C, HW_TILE)
                  g_ref, s3_ref, t3_ref,   # (C, 1) sublane-major vectors
                  o_ref):                  # (C, HW_TILE)
    x = x_ref[...].astype(jnp.float32)
    xr = xr_ref[...].astype(jnp.float32)
    wf = wf_ref[...].astype(jnp.float32)
    g = g_ref[...]
    s3 = s3_ref[...]
    t3 = t3_ref[...]
    out = (x + xr * g * wf) * s3 + t3
    o_ref[...] = out.astype(o_ref.dtype)


def _pick_hw_tile(hw_pad, c):
    """Largest multiple-of-128 divisor of hw_pad whose (C, tile) f32 block
    stays around <=2 MiB, so 4 streams x double buffering fit comfortably in
    scoped VMEM on every generation (incl. v7x's 64 MiB physical)."""
    cap = max(128, ((2 * 1024 * 1024) // (4 * c)) // 128 * 128)
    if hw_pad <= cap:
        return hw_pad
    best = 128
    t = 256
    while t <= cap:
        if hw_pad % t == 0:
            best = t
        t += 128
    return best


def channel_distilling(x, x_ref_in, w_feat, params):
    """x, x_ref_in, w_feat: [B, C, H, W] float32 (NCHW, as in PyTorch)."""
    B, C, H, W = x.shape
    HW = H * W
    HW_pad = pl.cdiv(HW, 128) * 128
    need_mask = HW_pad != HW

    x3 = x.reshape(B, C, HW)
    xr3 = x_ref_in.reshape(B, C, HW)
    wf3 = w_feat.reshape(B, C, HW)
    if need_mask:
        pad = ((0, 0), (0, 0), (0, HW_pad - HW))
        x3 = jnp.pad(x3, pad)
        xr3 = jnp.pad(xr3, pad)
        wf3 = jnp.pad(wf3, pad)

    hw_tile = _pick_hw_tile(HW_pad, C)
    n_tiles = HW_pad // hw_tile

    act_spec = pl.BlockSpec((None, C, hw_tile), lambda b, t: (b, 0, t))
    vec_spec = pl.BlockSpec((None, C, 1), lambda b, t: (b, 0, 0))
    par_spec = pl.BlockSpec((C, 1), lambda b, t: (0, 0))

    # ---- Phase 1: pooling (Pallas) --------------------------------------
    sum_x, sum_xr, max_x, max_xr = pl.pallas_call(
        functools.partial(_pool_kernel, hw_tile=hw_tile, true_hw=HW,
                          need_mask=need_mask),
        out_shape=tuple(jax.ShapeDtypeStruct((B, C, 1), jnp.float32)
                        for _ in range(4)),
        grid=(B, n_tiles),
        in_specs=[act_spec, act_spec],
        out_specs=(vec_spec, vec_spec, vec_spec, vec_spec),
        compiler_params=pltpu.CompilerParams(
            dimension_semantics=("parallel", "arbitrary")),
    )(x3, xr3)

    # ---- Phase 1b: tiny gate MLP, batched over B (plain JAX) ------------
    avg_x = sum_x[:, :, 0] / HW
    avg_xr = sum_xr[:, :, 0] / HW
    feat = jnp.concatenate(
        [avg_x, avg_xr, max_x[:, :, 0], max_xr[:, :, 0]], axis=1)   # (B, 4C)

    # Fold bn1 into dense1 and bn2 into dense2 (eval-mode affine BN).
    w1f = params["w1"] * params["s1"]
    b1f = params["b1"] * params["s1"] + params["t1"]
    w2f = params["w2"] * params["s2"]
    b2f = params["b2"] * params["s2"] + params["t2"]

    h = jnp.maximum(feat @ w1f + b1f, 0.0)
    gate = jax.nn.sigmoid(h @ w2f + b2f)                            # (B, C)
    gate3 = gate.astype(jnp.float32)[:, :, None]                    # (B, C, 1)

    s3 = params["s3"].reshape(C, 1).astype(jnp.float32)
    t3 = params["t3"].reshape(C, 1).astype(jnp.float32)

    # ---- Phase 2: streaming elementwise kernel (Pallas) -----------------
    out3 = pl.pallas_call(
        _apply_kernel,
        out_shape=jax.ShapeDtypeStruct((B, C, HW_pad), x.dtype),
        grid=(B, n_tiles),
        in_specs=[act_spec, act_spec, act_spec, vec_spec, par_spec, par_spec],
        out_specs=act_spec,
        compiler_params=pltpu.CompilerParams(
            dimension_semantics=("parallel", "parallel")),
    )(x3, xr3, wf3, gate3, s3, t3)

    if need_mask:
        out3 = out3[:, :, :HW]
    return out3.reshape(B, C, H, W)


def init_params(channel_num, reduction=8, key=jax.random.PRNGKey(42)):
    hidden = channel_num // reduction
    in1, out1 = 4 * channel_num, hidden
    in2, out2 = hidden, channel_num
    k1, k2 = jax.random.split(key)

    # xavier_uniform (symmetric bound, so (in, out) layout is equivalent).
    def xavier(k, fan_in, fan_out):
        bound = (6.0 / (fan_in + fan_out)) ** 0.5
        return jax.random.uniform(
            k, (fan_in, fan_out), jnp.float32, minval=-bound, maxval=bound)

    eps = 1e-5
    inv = 1.0 / jnp.sqrt(1.0 + eps)  # eval-mode BN with fresh running stats

    return {
        "w1": xavier(k1, in1, out1),
        "b1": jnp.zeros((1, out1), jnp.float32),
        "w2": xavier(k2, in2, out2),
        "b2": jnp.zeros((1, out2), jnp.float32),
        "s1": jnp.full((1, out1), inv, jnp.float32),
        "t1": jnp.zeros((1, out1), jnp.float32),
        "s2": jnp.full((1, out2), inv, jnp.float32),
        "t2": jnp.zeros((1, out2), jnp.float32),
        "s3": jnp.full((1, channel_num), inv, jnp.float32),
        "t3": jnp.zeros((1, channel_num), jnp.float32),
    }


def reference(x, x_ref, w_feat, params):
    """Pure-JAX reference matching the PyTorch forward (eval-mode BN)."""
    xc = jnp.concatenate([x, x_ref], axis=1)                # (B, 2C, H, W)
    avg = jnp.mean(xc, axis=(2, 3))                         # (B, 2C)
    mx = jnp.max(xc, axis=(2, 3))                           # (B, 2C)
    feat = jnp.concatenate([avg, mx], axis=1)               # (B, 4C)
    h = feat @ params["w1"] + params["b1"]
    h = jnp.maximum(h * params["s1"] + params["t1"], 0.0)
    cw = h @ params["w2"] + params["b2"]
    cw = jax.nn.sigmoid(cw * params["s2"] + params["t2"])   # (B, C)
    com = x_ref * cw[:, :, None, None] * w_feat
    out = x + com
    return out * params["s3"][:, :, None, None] + params["t3"][:, :, None, None]


if __name__ == "__main__":
    B, C, H, W = 2, 16, 16, 16
    reduction = 8

    key = jax.random.PRNGKey(0)
    kx, kr, kw = jax.random.split(key, 3)
    x = jax.random.normal(kx, (B, C, H, W), jnp.float32)
    x_ref = jax.random.normal(kr, (B, C, H, W), jnp.float32)
    w_feat = jax.random.uniform(kw, (B, C, H, W), jnp.float32)

    params = init_params(C, reduction)

    out = channel_distilling(x, x_ref, w_feat, params)
    out = jax.block_until_ready(out)

    ref = reference(x, x_ref, w_feat, params)
    assert out.shape == (B, C, H, W)
    assert bool(jnp.all(jnp.isfinite(out)))
    assert bool(jnp.allclose(out, ref, atol=1e-4, rtol=1e-4))

    print("KERNEL_OK")
</pallas_src>

<mosaic_0001>
module attributes {stable_mosaic.version = 11 : i64} {
  func.func @_pool_kernel(%arg0: i32, %arg1: i32, %arg2: memref<1x16x256xf32, #tpu.memory_space<vmem>>, %arg3: memref<1x16x256xf32, #tpu.memory_space<vmem>>, %arg4: memref<1x16x1xf32, #tpu.memory_space<vmem>>, %arg5: memref<1x16x1xf32, #tpu.memory_space<vmem>>, %arg6: memref<1x16x1xf32, #tpu.memory_space<vmem>>, %arg7: memref<1x16x1xf32, #tpu.memory_space<vmem>>) attributes {dimension_semantics = [#tpu.dimension_semantics<parallel>, #tpu.dimension_semantics<arbitrary>], iteration_bounds = array<i64: 2, 1>, scalar_prefetch = 0 : i64, scratch_operands = 0 : i64, tpu.core_type = #tpu.core_type<tc>, window_params = [{transform_indices = @transform_0, window_bounds = array<i64: 1, 16, 256>}, {transform_indices = @transform_1, window_bounds = array<i64: 1, 16, 256>}, {transform_indices = @transform_2, window_bounds = array<i64: 1, 16, 1>}, {transform_indices = @transform_3, window_bounds = array<i64: 1, 16, 1>}, {transform_indices = @transform_4, window_bounds = array<i64: 1, 16, 1>}, {transform_indices = @transform_5, window_bounds = array<i64: 1, 16, 1>}]} {
    %c0_i32 = arith.constant 0 : i32
    %0 = arith.cmpi eq, %arg1, %c0_i32 : i32
    %1 = arith.extui %0 : i1 to i32
    %c0_i32_0 = arith.constant 0 : i32
    %2 = arith.cmpi ne, %1, %c0_i32_0 : i32
    scf.if %2 {
      %cst_33 = arith.constant 0.000000e+00 : f32
      %39 = vector.broadcast %cst_33 : f32 to vector<16x1xf32>
      %c0_34 = arith.constant 0 : index
      %c0_35 = arith.constant 0 : index
      %c0_36 = arith.constant 0 : index
      %40 = vector.load %arg4[%c0_34, %c0_35, %c0_36] : memref<1x16x1xf32, #tpu.memory_space<vmem>>, vector<1x16x1xf32>
      %41 = vector.shape_cast %40 : vector<1x16x1xf32> to vector<16x1xf32>
      %42 = vector.shape_cast %39 : vector<16x1xf32> to vector<1x16x1xf32>
      tpu.vector_store %arg4[%c0_34, %c0_35, %c0_36], %42 {strides = array<i32>} : memref<1x16x1xf32, #tpu.memory_space<vmem>>, vector<1x16x1xf32>,
      %cst_37 = arith.constant 0.000000e+00 : f32
      %43 = vector.broadcast %cst_37 : f32 to vector<16x1xf32>
      %c0_38 = arith.constant 0 : index
      %c0_39 = arith.constant 0 : index
      %c0_40 = arith.constant 0 : index
      %44 = vector.load %arg5[%c0_38, %c0_39, %c0_40] : memref<1x16x1xf32, #tpu.memory_space<vmem>>, vector<1x16x1xf32>
      %45 = vector.shape_cast %44 : vector<1x16x1xf32> to vector<16x1xf32>
      %46 = vector.shape_cast %43 : vector<16x1xf32> to vector<1x16x1xf32>
      tpu.vector_store %arg5[%c0_38, %c0_39, %c0_40], %46 {strides = array<i32>} : memref<1x16x1xf32, #tpu.memory_space<vmem>>, vector<1x16x1xf32>,
      %cst_41 = arith.constant 0xFF800000 : f32
      %47 = vector.broadcast %cst_41 : f32 to vector<16x1xf32>
      %c0_42 = arith.constant 0 : index
      %c0_43 = arith.constant 0 : index
      %c0_44 = arith.constant 0 : index
      %48 = vector.load %arg6[%c0_42, %c0_43, %c0_44] : memref<1x16x1xf32, #tpu.memory_space<vmem>>, vector<1x16x1xf32>
      %49 = vector.shape_cast %48 : vector<1x16x1xf32> to vector<16x1xf32>
      %50 = vector.shape_cast %47 : vector<16x1xf32> to vector<1x16x1xf32>
      tpu.vector_store %arg6[%c0_42, %c0_43, %c0_44], %50 {strides = array<i32>} : memref<1x16x1xf32, #tpu.memory_space<vmem>>, vector<1x16x1xf32>,
      %cst_45 = arith.constant 0xFF800000 : f32
      %51 = vector.broadcast %cst_45 : f32 to vector<16x1xf32>
      %c0_46 = arith.constant 0 : index
      %c0_47 = arith.constant 0 : index
      %c0_48 = arith.constant 0 : index
      %52 = vector.load %arg7[%c0_46, %c0_47, %c0_48] : memref<1x16x1xf32, #tpu.memory_space<vmem>>, vector<1x16x1xf32>
      %53 = vector.shape_cast %52 : vector<1x16x1xf32> to vector<16x1xf32>
      %54 = vector.shape_cast %51 : vector<16x1xf32> to vector<1x16x1xf32>
      tpu.vector_store %arg7[%c0_46, %c0_47, %c0_48], %54 {strides = array<i32>} : memref<1x16x1xf32, #tpu.memory_space<vmem>>, vector<1x16x1xf32>,
    } else {
    }
    %c0 = arith.constant 0 : index
    %c0_1 = arith.constant 0 : index
    %c0_2 = arith.constant 0 : index
    %3 = vector.load %arg2[%c0, %c0_1, %c0_2] : memref<1x16x256xf32, #tpu.memory_space<vmem>>, vector<1x16x256xf32>
    %4 = vector.shape_cast %3 : vector<1x16x256xf32> to vector<16x256xf32>
    %c0_3 = arith.constant 0 : index
    %c0_4 = arith.constant 0 : index
    %c0_5 = arith.constant 0 : index
    %5 = vector.load %arg3[%c0_3, %c0_4, %c0_5] : memref<1x16x256xf32, #tpu.memory_space<vmem>>, vector<1x16x256xf32>
    %6 = vector.shape_cast %5 : vector<1x16x256xf32> to vector<16x256xf32>
    %c0_6 = arith.constant 0 : index
    %c0_7 = arith.constant 0 : index
    %c0_8 = arith.constant 0 : index
    %7 = vector.load %arg4[%c0_6, %c0_7, %c0_8] : memref<1x16x1xf32, #tpu.memory_space<vmem>>, vector<1x16x1xf32>
    %8 = vector.shape_cast %7 : vector<1x16x1xf32> to vector<16x1xf32>
    %cst = arith.constant dense<0.000000e+00> : vector<16xf32>
    %9 = vector.multi_reduction <add>, %4, %cst [1] : vector<16x256xf32> to vector<16xf32>
    %10 = vector.shape_cast %9 : vector<16xf32> to vector<16x1xf32>
    %11 = arith.addf %8, %10 : vector<16x1xf32>
    %c0_9 = arith.constant 0 : index
    %c0_10 = arith.constant 0 : index
    %c0_11 = arith.constant 0 : index
    %12 = vector.load %arg4[%c0_9, %c0_10, %c0_11] : memref<1x16x1xf32, #tpu.memory_space<vmem>>, vector<1x16x1xf32>
    %13 = vector.shape_cast %12 : vector<1x16x1xf32> to vector<16x1xf32>
    %14 = vector.shape_cast %11 : vector<16x1xf32> to vector<1x16x1xf32>
    tpu.vector_store %arg4[%c0_9, %c0_10, %c0_11], %14 {strides = array<i32>} : memref<1x16x1xf32, #tpu.memory_space<vmem>>, vector<1x16x1xf32>,
    %c0_12 = arith.constant 0 : index
    %c0_13 = arith.constant 0 : index
    %c0_14 = arith.constant 0 : index
    %15 = vector.load %arg5[%c0_12, %c0_13, %c0_14] : memref<1x16x1xf32, #tpu.memory_space<vmem>>, vector<1x16x1xf32>
    %16 = vector.shape_cast %15 : vector<1x16x1xf32> to vector<16x1xf32>
    %cst_15 = arith.constant dense<0.000000e+00> : vector<16xf32>
    %17 = vector.multi_reduction <add>, %6, %cst_15 [1] : vector<16x256xf32> to vector<16xf32>
    %18 = vector.shape_cast %17 : vector<16xf32> to vector<16x1xf32>
    %19 = arith.addf %16, %18 : vector<16x1xf32>
    %c0_16 = arith.constant 0 : index
    %c0_17 = arith.constant 0 : index
    %c0_18 = arith.constant 0 : index
    %20 = vector.load %arg5[%c0_16, %c0_17, %c0_18] : memref<1x16x1xf32, #tpu.memory_space<vmem>>, vector<1x16x1xf32>
    %21 = vector.shape_cast %20 : vector<1x16x1xf32> to vector<16x1xf32>
    %22 = vector.shape_cast %19 : vector<16x1xf32> to vector<1x16x1xf32>
    tpu.vector_store %arg5[%c0_16, %c0_17, %c0_18], %22 {strides = array<i32>} : memref<1x16x1xf32, #tpu.memory_space<vmem>>, vector<1x16x1xf32>,
    %c0_19 = arith.constant 0 : index
    %c0_20 = arith.constant 0 : index
    %c0_21 = arith.constant 0 : index
    %23 = vector.load %arg6[%c0_19, %c0_20, %c0_21] : memref<1x16x1xf32, #tpu.memory_space<vmem>>, vector<1x16x1xf32>
    %24 = vector.shape_cast %23 : vector<1x16x1xf32> to vector<16x1xf32>
    %cst_22 = arith.constant dense<0xFF800000> : vector<16xf32>
    %25 = vector.multi_reduction <maximumf>, %4, %cst_22 [1] : vector<16x256xf32> to vector<16xf32>
    %26 = vector.shape_cast %25 : vector<16xf32> to vector<16x1xf32>
    %27 = arith.maximumf %24, %26 : vector<16x1xf32>
    %c0_23 = arith.constant 0 : index
    %c0_24 = arith.constant 0 : index
    %c0_25 = arith.constant 0 : index
    %28 = vector.load %arg6[%c0_23, %c0_24, %c0_25] : memref<1x16x1xf32, #tpu.memory_space<vmem>>, vector<1x16x1xf32>
    %29 = vector.shape_cast %28 : vector<1x16x1xf32> to vector<16x1xf32>
    %30 = vector.shape_cast %27 : vector<16x1xf32> to vector<1x16x1xf32>
    tpu.vector_store %arg6[%c0_23, %c0_24, %c0_25], %30 {strides = array<i32>} : memref<1x16x1xf32, #tpu.memory_space<vmem>>, vector<1x16x1xf32>,
    %c0_26 = arith.constant 0 : index
    %c0_27 = arith.constant 0 : index
    %c0_28 = arith.constant 0 : index
    %31 = vector.load %arg7[%c0_26, %c0_27, %c0_28] : memref<1x16x1xf32, #tpu.memory_space<vmem>>, vector<1x16x1xf32>
    %32 = vector.shape_cast %31 : vector<1x16x1xf32> to vector<16x1xf32>
    %cst_29 = arith.constant dense<0xFF800000> : vector<16xf32>
    %33 = vector.multi_reduction <maximumf>, %6, %cst_29 [1] : vector<16x256xf32> to vector<16xf32>
    %34 = vector.shape_cast %33 : vector<16xf32> to vector<16x1xf32>
    %35 = arith.maximumf %32, %34 : vector<16x1xf32>
    %c0_30 = arith.constant 0 : index
    %c0_31 = arith.constant 0 : index
    %c0_32 = arith.constant 0 : index
    %36 = vector.load %arg7[%c0_30, %c0_31, %c0_32] : memref<1x16x1xf32, #tpu.memory_space<vmem>>, vector<1x16x1xf32>
    %37 = vector.shape_cast %36 : vector<1x16x1xf32> to vector<16x1xf32>
    %38 = vector.shape_cast %35 : vector<16x1xf32> to vector<1x16x1xf32>
    tpu.vector_store %arg7[%c0_30, %c0_31, %c0_32], %38 {strides = array<i32>} : memref<1x16x1xf32, #tpu.memory_space<vmem>>, vector<1x16x1xf32>,
    return
  }
  func.func @transform_0(%arg0: i32, %arg1: i32) -> (i32, i32, i32) {
    %c0_i32 = arith.constant 0 : i32
    %c0_i32_0 = arith.constant 0 : i32
    return %arg0, %c0_i32, %arg1 : i32, i32, i32
  }
  func.func @transform_1(%arg0: i32, %arg1: i32) -> (i32, i32, i32) {
    %c0_i32 = arith.constant 0 : i32
    %c0_i32_0 = arith.constant 0 : i32
    return %arg0, %c0_i32, %arg1 : i32, i32, i32
  }
  func.func @transform_2(%arg0: i32, %arg1: i32) -> (i32, i32, i32) {
    %c0_i32 = arith.constant 0 : i32
    %c0_i32_0 = arith.constant 0 : i32
    %c0_i32_1 = arith.constant 0 : i32
    return %arg0, %c0_i32, %c0_i32_0 : i32, i32, i32
  }
  func.func @transform_3(%arg0: i32, %arg1: i32) -> (i32, i32, i32) {
    %c0_i32 = arith.constant 0 : i32
    %c0_i32_0 = arith.constant 0 : i32
    %c0_i32_1 = arith.constant 0 : i32
    return %arg0, %c0_i32, %c0_i32_0 : i32, i32, i32
  }
  func.func @transform_4(%arg0: i32, %arg1: i32) -> (i32, i32, i32) {
    %c0_i32 = arith.constant 0 : i32
    %c0_i32_0 = arith.constant 0 : i32
    %c0_i32_1 = arith.constant 0 : i32
    return %arg0, %c0_i32, %c0_i32_0 : i32, i32, i32
  }
  func.func @transform_5(%arg0: i32, %arg1: i32) -> (i32, i32, i32) {
    %c0_i32 = arith.constant 0 : i32
    %c0_i32_0 = arith.constant 0 : i32
    %c0_i32_1 = arith.constant 0 : i32
    return %arg0, %c0_i32, %c0_i32_0 : i32, i32, i32
  }
}

</mosaic_0001>

<llo_original>
// kernel: tpu_custom_call.1
$region0: #{tpu_custom_call.1}
  #allocation0 [shape = 'u32[]', space=smem, size = 0x4, offset = 0x4, fixed_abs, tag = 'smem constant byte address 0x4 - core index']
  #allocation1 [shape = 'u32[144,128]{1,0:T(1,128)}', space=vmem, size = 0x12000, scoped, tag = 'internal scratch']
  %s0 = inlined_call_operand.hbm [shape: f32[2,16,256], index: 0, kind: input, shape index: {}]
  %s1 = inlined_call_operand.hbm [shape: f32[2,16,256], index: 1, kind: input, shape index: {}]
  %s2 = inlined_call_operand.vmem [shape: f32[2,16,1], index: 2, kind: output, shape index: {0}]
  %s3 = inlined_call_operand.vmem [shape: f32[2,16,1], index: 3, kind: output, shape index: {1}]
  %s4 = inlined_call_operand.vmem [shape: f32[2,16,1], index: 4, kind: output, shape index: {2}]
  %s5 = inlined_call_operand.vmem [shape: f32[2,16,1], index: 5, kind: output, shape index: {3}]
  %6 = xla_tuple %s2, %s3, %s4, %s5
  %s7 = sld [smem:[#allocation0]]
  $region77: #{tpu_custom_call.1} parent=0
    _
  %s9 = ssub.s32 1, %s7
  %s10 = scalar_select 0, %s9, %s7
  $region1: #{tpu_custom_call.1} parent=0
    #allocation2 [shape = 'u8[32768]{0}', space=vmem, size = 0x8000, scoped, tag = 'input window, operand 0']
    #allocation3 [shape = 's32[2]{0}', space=sflag, size = 0x8, scoped, tag = 'scoped memory for tpu_custom_call.1']
    #allocation4 [shape = 'u8[32768]{0}', space=vmem, size = 0x8000, scoped, tag = 'input window, operand 1']
    #allocation5 [shape = 's32[2]{0}', space=sflag, size = 0x8, scoped, tag = 'scoped memory for tpu_custom_call.1']
    %11 = vsyncpa [#allocation3], 0
    %s12 = scalar_lea.sflag [#allocation3], 1
    %13 = vsyncpa %s12, 0
    %14 = vsyncpa [#allocation5], 0
    %s15 = scalar_lea.sflag [#allocation5], 1
    %16 = vsyncpa %s15, 0
    loop: start=0, step=1, limit=4
    $region2: #{tpu_custom_call.1} parent=1 // loop_pre_header
      _
    $region3: #{tpu_custom_call.1} parent=1 // loop_header
      %s18 = sphi 0, %s22
      %p19 = scmp.ge.s32.totalorder %s18, 4
      %s25 = sphi 0, %s37
      %s26 = sphi 0, %s33
      %s27 = sphi 0, %s25
      %s28 = sphi 0, %s26
      %s29 = sphi 0, %s27
      %s30 = sphi 0, %s28
      %s42 = sphi 0, %s44
      %s45 = sphi 0, %s42
      %s46 = sphi 0, %s45
      %s62 = sphi 0, %s46
      %s70 = sphi 0, %s72
      %s73 = sphi 0, %s70
      %s74 = sphi 0, %s73
      %s90 = sphi 0, %s74
      %s96 = sphi 0, %s98
      %s99 = sphi 0, %s96
      %s100 = sphi 0, %s99
      %s116 = sphi 0, %s100
      %s122 = sphi 0, %s124
      %s125 = sphi 0, %s122
      %s126 = sphi 0, %s125
      %s142 = sphi 0, %s126
      %s148 = sphi 0, %s150
      %s151 = sphi 0, %s148
      %s152 = sphi 0, %s151
      %s168 = sphi 0, %s152
      %s174 = sphi 0, %s176
      %s177 = sphi 0, %s174
      %s178 = sphi 0, %s177
      %s194 = sphi 0, %s178
    $region4: #{tpu_custom_call.1} parent=1 // loop_header_branch
      %21 = sbr.rel (%p19) target = $region8
    $region5: #{tpu_custom_call.1} parent=1 // loop_body
      %s23 = ssub.s32 %s18, 1
      %s24 = ssub.s32 %s18, 2
      %s31 = sadd.s32 1, %s26
      %p32 = scmp.ge.s32.totalorder %s31, 1
      %s33 = scalar_select %p32, 0, %s31
      %s34 = sadd.s32 1, %s25
      %s35 = scalar_select %p32, %s34, %s25
      %p36 = scmp.ge.s32.totalorder %s35, 2
      %s37 = scalar_select %p36, 0, %s35
      %s38 = ssub.s32 %s25, %s37
      %s39 = ssub.s32 %s26, %s33
      %s40 = sor.u32 %s38, %s39
      %p41 = scmp.eq.s32.totalorder %s40, 0
      %s43 = sadd.s32 %s42, 1
      %s44 = scalar_select %p41, %s42, %s43
      %p47 = pneg %p41
      %p48 = scmp.eq.s32.totalorder %s18, 1
      %p49 = por %p47, %p48
      %p50 = scmp.ne.s32.totalorder %s42, %s45
      %p51 = scmp.eq.s32.totalorder %s18, 0
      %p52 = por %p50, %p51
      %p53 = scmp.ne.s32.totalorder %s42, %s45
      %p54 = scmp.eq.s32.totalorder %s23, 1
      %p55 = por %p53, %p54
      %p56 = scmp.ne.s32.totalorder %s45, %s46
      %p57 = scmp.eq.s32.totalorder %s23, 0
      %p58 = por %p56, %p57
      %p59 = scmp.ne.s32.totalorder %s45, %s46
      %p60 = scmp.eq.s32.totalorder %s24, 1
      %p61 = por %p59, %p60
      %p63 = scmp.ne.s32.totalorder %s46, %s62
      %p64 = scmp.eq.s32.totalorder %s24, 0
      %p65 = por %p63, %p64
      %s66 = ssub.s32 %s25, %s37
      %s67 = ssub.s32 %s26, %s33
      %s68 = sor.u32 %s66, %s67
      %p69 = scmp.eq.s32.totalorder %s68, 0
      %s71 = sadd.s32 %s70, 1
      %s72 = scalar_select %p69, %s70, %s71
      %p75 = pneg %p69
      %p76 = scmp.eq.s32.totalorder %s18, 1
      %p77 = por %p75, %p76
      %p78 = scmp.ne.s32.totalorder %s70, %s73
      %p79 = scmp.eq.s32.totalorder %s18, 0
      %p80 = por %p78, %p79
      %p81 = scmp.ne.s32.totalorder %s70, %s73
      %p82 = scmp.eq.s32.totalorder %s23, 1
      %p83 = por %p81, %p82
      %p84 = scmp.ne.s32.totalorder %s73, %s74
      %p85 = scmp.eq.s32.totalorder %s23, 0
      %p86 = por %p84, %p85
      %p87 = scmp.ne.s32.totalorder %s73, %s74
      %p88 = scmp.eq.s32.totalorder %s24, 1
      %p89 = por %p87, %p88
      %p91 = scmp.ne.s32.totalorder %s74, %s90
      %p92 = scmp.eq.s32.totalorder %s24, 0
      %p93 = por %p91, %p92
      %s94 = ssub.s32 %s25, %s37
      %p95 = scmp.eq.s32.totalorder %s94, 0
      %s97 = sadd.s32 %s96, 1
      %s98 = scalar_select %p95, %s96, %s97
      %p101 = pneg %p95
      %p102 = scmp.eq.s32.totalorder %s18, 1
      %p103 = por %p101, %p102
      %p104 = scmp.ne.s32.totalorder %s96, %s99
      %p105 = scmp.eq.s32.totalorder %s18, 0
      %p106 = por %p104, %p105
      %p107 = scmp.ne.s32.totalorder %s96, %s99
      %p108 = scmp.eq.s32.totalorder %s23, 1
      %p109 = por %p107, %p108
      %p110 = scmp.ne.s32.totalorder %s99, %s100
      %p111 = scmp.eq.s32.totalorder %s23, 0
      %p112 = por %p110, %p111
      %p113 = scmp.ne.s32.totalorder %s99, %s100
      %p114 = scmp.eq.s32.totalorder %s24, 1
      %p115 = por %p113, %p114
      %p117 = scmp.ne.s32.totalorder %s100, %s116
      %p118 = scmp.eq.s32.totalorder %s24, 0
      %p119 = por %p117, %p118
      %s120 = ssub.s32 %s25, %s37
      %p121 = scmp.eq.s32.totalorder %s120, 0
      %s123 = sadd.s32 %s122, 1
      %s124 = scalar_select %p121, %s122, %s123
      %p127 = pneg %p121
      %p128 = scmp.eq.s32.totalorder %s18, 1
      %p129 = por %p127, %p128
      %p130 = scmp.ne.s32.totalorder %s122, %s125
      %p131 = scmp.eq.s32.totalorder %s18, 0
      %p132 = por %p130, %p131
      %p133 = scmp.ne.s32.totalorder %s122, %s125
      %p134 = scmp.eq.s32.totalorder %s23, 1
      %p135 = por %p133, %p134
      %p136 = scmp.ne.s32.totalorder %s125, %s126
      %p137 = scmp.eq.s32.totalorder %s23, 0
      %p138 = por %p136, %p137
      %p139 = scmp.ne.s32.totalorder %s125, %s126
      %p140 = scmp.eq.s32.totalorder %s24, 1
      %p141 = por %p139, %p140
      %p143 = scmp.ne.s32.totalorder %s126, %s142
      %p144 = scmp.eq.s32.totalorder %s24, 0
      %p145 = por %p143, %p144
      %s146 = ssub.s32 %s25, %s37
      %p147 = scmp.eq.s32.totalorder %s146, 0
      %s149 = sadd.s32 %s148, 1
      %s150 = scalar_select %p147, %s148, %s149
      %p153 = pneg %p147
      %p154 = scmp.eq.s32.totalorder %s18, 1
      %p155 = por %p153, %p154
      %p156 = scmp.ne.s32.totalorder %s148, %s151
      %p157 = scmp.eq.s32.totalorder %s18, 0
      %p158 = por %p156, %p157
      %p159 = scmp.ne.s32.totalorder %s148, %s151
      %p160 = scmp.eq.s32.totalorder %s23, 1
      %p161 = por %p159, %p160
      %p162 = scmp.ne.s32.totalorder %s151, %s152
      %p163 = scmp.eq.s32.totalorder %s23, 0
      %p164 = por %p162, %p163
      %p165 = scmp.ne.s32.totalorder %s151, %s152
      %p166 = scmp.eq.s32.totalorder %s24, 1
      %p167 = por %p165, %p166
      %p169 = scmp.ne.s32.totalorder %s152, %s168
      %p170 = scmp.eq.s32.totalorder %s24, 0
      %p171 = por %p169, %p170
      %s172 = ssub.s32 %s25, %s37
      %p173 = scmp.eq.s32.totalorder %s172, 0
      %s175 = sadd.s32 %s174, 1
      %s176 = scalar_select %p173, %s174, %s175
      %p179 = pneg %p173
      %p180 = scmp.eq.s32.totalorder %s18, 1
      %p181 = por %p179, %p180
      %p182 = scmp.ne.s32.totalorder %s174, %s177
      %p183 = scmp.eq.s32.totalorder %s18, 0
      %p184 = por %p182, %p183
      %p185 = scmp.ne.s32.totalorder %s174, %s177
      %p186 = scmp.eq.s32.totalorder %s23, 1
      %p187 = por %p185, %p186
      %p188 = scmp.ne.s32.totalorder %s177, %s178
      %p189 = scmp.eq.s32.totalorder %s23, 0
      %p190 = por %p188, %p189
      %p191 = scmp.ne.s32.totalorder %s177, %s178
      %p192 = scmp.eq.s32.totalorder %s24, 1
      %p193 = por %p191, %p192
      %p195 = scmp.ne.s32.totalorder %s178, %s194
      %p196 = scmp.eq.s32.totalorder %s24, 0
      %p197 = por %p195, %p196
      %p198 = scmp.le.s32.totalorder 1, %s18
      %p199 = scmp.lt.s32.totalorder %s18, 3
      %p200 = pnand %p198, %p199
      %p201 = pneg %p200
      // Predicated region
      $region9: #{tpu_custom_call.1} parent=5 // pred_check
        _
      $region10: #{tpu_custom_call.1} parent=5 // pred_check_branch
        %203 = sbr.rel (%p200) target = $region12
      $region11: #{tpu_custom_call.1} parent=5 // pred_region
        %s204 = ssub.s32 %s18, 1
      $region12: #{tpu_custom_call.1} parent=5 // pred_fallthru
        _
      %p205 = scmp.lt.s32.totalorder %s18, 2
      // Predicated region
      $region13: #{tpu_custom_call.1} parent=5 // pred_check
        %p206 = pneg %p205
      $region14: #{tpu_custom_call.1} parent=5 // pred_check_branch
        %208 = sbr.rel (%p206) target = $region16
      $region15: #{tpu_custom_call.1} parent=5 // pred_region
        // Predicated region
        $region17: #{tpu_custom_call.1} parent=15 // pred_check
          %p209 = pneg %p52
        $region18: #{tpu_custom_call.1} parent=15 // pred_check_branch
          %211 = sbr.rel (%p209) target = $region20
        $region19: #{tpu_custom_call.1} parent=15 // pred_region
          %s212 = sand.u32 %s42, 1
          %s213 = scalar_lea.sflag [#allocation3], %s212
          %s214 = sand.u32 %s42, 1
          %s215 = smul.addr %s214, 32
          %s216 = scalar_lea.vmem [#allocation2], %s215
          %s217 = smul.u32 2, %s26
          %s219 = ssub.s32 512, 512
          %220 = vsyncadd %s213, %s219
          %s221 = smul.addr %s25, 4
          %s222 = sadd.s32 %s217, %s221
          %s223 = smul.addr %s222, 128
          %s224 = scalar_lea.hbm %s0, %s223
          %s225 = sshll.u32 %s216, 4
          %s226 = int_to_ptr.vmem [resolvable:$true] %s225
          %231 = dma.hbm_to_vmem [thread:$0]  %s224, 512, %s226, %s213, 256, 256, 16
        $region20: #{tpu_custom_call.1} parent=15 // pred_fallthru
          _
        // Predicated region
        $region21: #{tpu_custom_call.1} parent=15 // pred_check
          %p232 = pneg %p80
        $region22: #{tpu_custom_call.1} parent=15 // pred_check_branch
          %234 = sbr.rel (%p232) target = $region24
        $region23: #{tpu_custom_call.1} parent=15 // pred_region
          %s235 = sand.u32 %s70, 1
          %s236 = scalar_lea.sflag [#allocation5], %s235
          %s237 = sand.u32 %s70, 1
          %s238 = smul.addr %s237, 32
          %s239 = scalar_lea.vmem [#allocation4], %s238
          %s240 = smul.u32 2, %s26
          %s242 = ssub.s32 512, 512
          %243 = vsyncadd %s236, %s242
          %s244 = smul.addr %s25, 4
          %s245 = sadd.s32 %s240, %s244
          %s246 = smul.addr %s245, 128
          %s247 = scalar_lea.hbm %s1, %s246
          %s248 = sshll.u32 %s239, 4
          %s249 = int_to_ptr.vmem [resolvable:$true] %s248
          %254 = dma.hbm_to_vmem [thread:$0]  %s247, 512, %s249, %s236, 256, 256, 16
        $region24: #{tpu_custom_call.1} parent=15 // pred_fallthru
          _
      $region16: #{tpu_custom_call.1} parent=5 // pred_fallthru
        _
      %p255 = scmp.le.s32.totalorder 1, %s18
      %p256 = scmp.lt.s32.totalorder %s18, 3
      %p257 = pnand %p255, %p256
      %p258 = pneg %p257
      // Predicated region
      $region25: #{tpu_custom_call.1} parent=5 // pred_check
        _
      $region26: #{tpu_custom_call.1} parent=5 // pred_check_branch
        %260 = sbr.rel (%p257) target = $region28
      $region27: #{tpu_custom_call.1} parent=5 // pred_region
        %s261 = ssub.s32 %s18, 1
        %s262 = sand.u32 %s45, 1
        %s263 = scalar_lea.sflag [#allocation3], %s262
        %s264 = sand.u32 %s45, 1
        %s265 = smul.addr %s264, 32
        %s266 = scalar_lea.vmem [#allocation2], %s265
        // Predicated region
        $region29: #{tpu_custom_call.1} parent=27 // pred_check
          %p267 = pneg %p58
        $region30: #{tpu_custom_call.1} parent=27 // pred_check_branch
          %269 = sbr.rel (%p267) target = $region32
        $region31: #{tpu_custom_call.1} parent=27 // pred_region
          %270 = dma.done %s263, 512
        $region32: #{tpu_custom_call.1} parent=27 // pred_fallthru
          _
        %s271 = sand.u32 %s73, 1
        %s272 = scalar_lea.sflag [#allocation5], %s271
        %s273 = sand.u32 %s73, 1
        %s274 = smul.addr %s273, 32
        %s275 = scalar_lea.vmem [#allocation4], %s274
        // Predicated region
        $region33: #{tpu_custom_call.1} parent=27 // pred_check
          %p276 = pneg %p86
        $region34: #{tpu_custom_call.1} parent=27 // pred_check_branch
          %278 = sbr.rel (%p276) target = $region36
        $region35: #{tpu_custom_call.1} parent=27 // pred_region
          %279 = dma.done %s272, 512
        $region36: #{tpu_custom_call.1} parent=27 // pred_fallthru
          _
        %s280 = sand.u32 %s45, 1
        %s281 = scalar_lea.sflag [#allocation3], %s280
        %s282 = sand.u32 %s45, 1
        %s283 = smul.addr %s282, 32
        %s284 = scalar_lea.vmem [#allocation2], %s283
        %p285 = pneg %p58
        %p286 = pneg %p55
        %s287 = sand.u32 %s73, 1
        %s288 = scalar_lea.sflag [#allocation5], %s287
        %s289 = sand.u32 %s73, 1
        %s290 = smul.addr %s289, 32
        %s291 = scalar_lea.vmem [#allocation4], %s290
        %p292 = pneg %p86
        %p293 = pneg %p83
        %p294 = pneg %p112
        %p295 = pneg %p109
        %p296 = scmp.lt.s32.totalorder %s27, 1
        %s297 = scalar_select %p296, %s27, 1
        %s298 = smul.addr %s297, 2
        %s299 = smul.addr %s298, 8
        %s300 = scalar_lea.vmem %s2, %s299
        %p301 = pneg %p138
        %p302 = pneg %p135
        %p303 = scmp.lt.s32.totalorder %s27, 1
        %s304 = scalar_select %p303, %s27, 1
        %s305 = smul.addr %s304, 2
        %s306 = smul.addr %s305, 8
        %s307 = scalar_lea.vmem %s3, %s306
        %p308 = pneg %p164
        %p309 = pneg %p161
        %p310 = scmp.lt.s32.totalorder %s27, 1
        %s311 = scalar_select %p310, %s27, 1
        %s312 = smul.addr %s311, 2
        %s313 = smul.addr %s312, 8
        %s314 = scalar_lea.vmem %s4, %s313
        %p315 = pneg %p190
        %p316 = pneg %p187
        %p317 = scmp.lt.s32.totalorder %s27, 1
        %s318 = scalar_select %p317, %s27, 1
        %s319 = smul.addr %s318, 2
        %s320 = smul.addr %s319, 8
        %s321 = scalar_lea.vmem %s5, %s320
        %s322 = smul.u32 2, %s28
        %s323 = smul.u32 2, %s28
        %p324 = scmp.lt.s32.totalorder %s27, 1
        %s325 = scalar_select %p324, %s27, 1
        %s326 = smul.addr %s325, 2
        %s327 = smul.addr %s326, 8
        %s328 = scalar_lea.vmem %s2, %s327
        %p329 = scmp.lt.s32.totalorder %s27, 1
        %s330 = scalar_select %p329, %s27, 1
        %s331 = smul.addr %s330, 2
        %s332 = smul.addr %s331, 8
        %s333 = scalar_lea.vmem %s3, %s332
        %p334 = scmp.lt.s32.totalorder %s27, 1
        %s335 = scalar_select %p334, %s27, 1
        %s336 = smul.addr %s335, 2
        %s337 = smul.addr %s336, 8
        %s338 = scalar_lea.vmem %s4, %s337
        %p339 = scmp.lt.s32.totalorder %s27, 1
        %s340 = scalar_select %p339, %s27, 1
        %s341 = smul.addr %s340, 2
        %s342 = smul.addr %s341, 8
        %s343 = scalar_lea.vmem %s5, %s342
        %p344 = scmp.eq.s32.totalorder %s28, 0
        // Predicated region
        $region37: #{tpu_custom_call.1} parent=27 // pred_check
          %p345 = pneg %p344
        $region38: #{tpu_custom_call.1} parent=27 // pred_check_branch
          %347 = sbr.rel (%p345) target = $region40
        $region39: #{tpu_custom_call.1} parent=27 // pred_region
          %vm348 = vcmask 7168
          %349 = vst.msk [vmem:[%s328] sm:$0xff] %vm348, 0.0
          %350 = vst.msk [vmem:[%s328 + $0x8] sm:$0xff] %vm348, 0.0
          %351 = vst.msk [vmem:[%s333] sm:$0xff] %vm348, 0.0
          %352 = vst.msk [vmem:[%s333 + $0x8] sm:$0xff] %vm348, 0.0
          %353 = vst.msk [vmem:[%s338] sm:$0xff] %vm348, -inf
          %354 = vst.msk [vmem:[%s338 + $0x8] sm:$0xff] %vm348, -inf
          %355 = vst.msk [vmem:[%s343] sm:$0xff] %vm348, -inf
          %356 = vst.msk [vmem:[%s343 + $0x8] sm:$0xff] %vm348, -inf
        $region40: #{tpu_custom_call.1} parent=27 // pred_fallthru
          _
        %v357 = vld [vmem:[%s266] sm:$0xff]
        %v358 = vld [vmem:[%s266 + $0x8] sm:$0xff]
        %v359 = vld [vmem:[%s266 + $0x10] sm:$0xff]
        %v360 = vld [vmem:[%s266 + $0x18] sm:$0xff]
        %v361 = vld [vmem:[%s275] sm:$0xff]
        %v362 = vld [vmem:[%s275 + $0x8] sm:$0xff]
        %v363 = vld [vmem:[%s275 + $0x10] sm:$0xff]
        %v364 = vld [vmem:[%s275 + $0x18] sm:$0xff]
        %v365 = vld [vmem:[%s328] sm:$0xff]
        %v366 = vld [vmem:[%s328 + $0x8] sm:$0xff]
        %v367 = vadd.f32 %v357, %v358
        %368 = vadd.xlane.f32.xlu0 %v367
        %v369 = vpop.xlane.xlu0 %368
        %v370 = vadd.f32 %v359, %v360
        %371 = vadd.xlane.f32.xlu0 %v370
        %v372 = vpop.xlane.xlu0 %371
        %v373 = vadd.f32 %v365, %v369
        %v374 = vadd.f32 %v366, %v372
        %vm375 = vcmask 7168
        %376 = vst.msk [vmem:[%s328] sm:$0xff] %vm375, %v373
        %377 = vst.msk [vmem:[%s328 + $0x8] sm:$0xff] %vm375, %v374
        %v378 = vld [vmem:[%s333] sm:$0xff]
        %v379 = vld [vmem:[%s333 + $0x8] sm:$0xff]
        %v380 = vadd.f32 %v361, %v362
        %381 = vadd.xlane.f32.xlu0 %v380
        %v382 = vpop.xlane.xlu0 %381
        %v383 = vadd.f32 %v363, %v364
        %384 = vadd.xlane.f32.xlu0 %v383
        %v385 = vpop.xlane.xlu0 %384
        %v386 = vadd.f32 %v378, %v382
        %v387 = vadd.f32 %v379, %v385
        %388 = vst.msk [vmem:[%s333] sm:$0xff] %vm375, %v386
        %389 = vst.msk [vmem:[%s333 + $0x8] sm:$0xff] %vm375, %v387
        %v390 = vld [vmem:[%s338] sm:$0xff]
        %v391 = vld [vmem:[%s338 + $0x8] sm:$0xff]
        %v392 = vmax.f32 %v357, %v358
        %393 = vmax.xlane.f32.xlu0 %v392
        %v394 = vpop.xlane.xlu0 %393
        %v395 = vmax.f32 %v359, %v360
        %396 = vmax.xlane.f32.xlu0 %v395
        %v397 = vpop.xlane.xlu0 %396
        %v398 = vmax.f32 %v390, %v394
        %v399 = vmax.f32 %v391, %v397
        %400 = vst.msk [vmem:[%s338] sm:$0xff] %vm375, %v398
        %401 = vst.msk [vmem:[%s338 + $0x8] sm:$0xff] %vm375, %v399
        %v402 = vld [vmem:[%s343] sm:$0xff]
        %v403 = vld [vmem:[%s343 + $0x8] sm:$0xff]
        %v404 = vmax.f32 %v361, %v362
        %405 = vmax.xlane.f32.xlu0 %v404
        %v406 = vpop.xlane.xlu0 %405
        %v407 = vmax.f32 %v363, %v364
        %408 = vmax.xlane.f32.xlu0 %v407
        %v409 = vpop.xlane.xlu0 %408
        %v410 = vmax.f32 %v402, %v406
        %v411 = vmax.f32 %v403, %v409
        %412 = vst.msk [vmem:[%s343] sm:$0xff] %vm375, %v410
        %413 = vst.msk [vmem:[%s343 + $0x8] sm:$0xff] %vm375, %v411
        %p414 = scmp.lt.s32.totalorder %s27, 1
        %s415 = scalar_select %p414, %s27, 1
        %s416 = smul.addr %s415, 2
        %s417 = smul.addr %s416, 8
        %s418 = scalar_lea.vmem %s2, %s417
        %p419 = scmp.lt.s32.totalorder %s27, 1
        %s420 = scalar_select %p419, %s27, 1
        %s421 = smul.addr %s420, 2
        %s422 = smul.addr %s421, 8
        %s423 = scalar_lea.vmem %s3, %s422
        %p424 = scmp.lt.s32.totalorder %s27, 1
        %s425 = scalar_select %p424, %s27, 1
        %s426 = smul.addr %s425, 2
        %s427 = smul.addr %s426, 8
        %s428 = scalar_lea.vmem %s4, %s427
        %p429 = scmp.lt.s32.totalorder %s27, 1
        %s430 = scalar_select %p429, %s27, 1
        %s431 = smul.addr %s430, 2
        %s432 = smul.addr %s431, 8
        %s433 = scalar_lea.vmem %s5, %s432
        // Predicated region
        $region41: #{tpu_custom_call.1} parent=27 // pred_check
          %p434 = pneg %p109
        $region42: #{tpu_custom_call.1} parent=27 // pred_check_branch
          %436 = sbr.rel (%p434) target = $region44
        $region43: #{tpu_custom_call.1} parent=27 // pred_region
          _
        $region44: #{tpu_custom_call.1} parent=27 // pred_fallthru
          _
        // Predicated region
        $region45: #{tpu_custom_call.1} parent=27 // pred_check
          %p437 = pneg %p135
        $region46: #{tpu_custom_call.1} parent=27 // pred_check_branch
          %439 = sbr.rel (%p437) target = $region48
        $region47: #{tpu_custom_call.1} parent=27 // pred_region
          _
        $region48: #{tpu_custom_call.1} parent=27 // pred_fallthru
          _
        // Predicated region
        $region49: #{tpu_custom_call.1} parent=27 // pred_check
          %p440 = pneg %p161
        $region50: #{tpu_custom_call.1} parent=27 // pred_check_branch
          %442 = sbr.rel (%p440) target = $region52
        $region51: #{tpu_custom_call.1} parent=27 // pred_region
          _
        $region52: #{tpu_custom_call.1} parent=27 // pred_fallthru
          _
        // Predicated region
        $region53: #{tpu_custom_call.1} parent=27 // pred_check
          %p443 = pneg %p187
        $region54: #{tpu_custom_call.1} parent=27 // pred_check_branch
          %445 = sbr.rel (%p443) target = $region56
        $region55: #{tpu_custom_call.1} parent=27 // pred_region
          _
        $region56: #{tpu_custom_call.1} parent=27 // pred_fallthru
          _
      $region28: #{tpu_custom_call.1} parent=5 // pred_fallthru
        _
      %p446 = scmp.le.s32.totalorder 2, %s18
      // Predicated region
      $region57: #{tpu_custom_call.1} parent=5 // pred_check
        %p447 = pneg %p446
      $region58: #{tpu_custom_call.1} parent=5 // pred_check_branch
        %449 = sbr.rel (%p447) target = $region60
      $region59: #{tpu_custom_call.1} parent=5 // pred_region
        %s450 = ssub.s32 %s18, 2
        // Predicated region
        $region61: #{tpu_custom_call.1} parent=59 // pred_check
          %p451 = pneg %p115
        $region62: #{tpu_custom_call.1} parent=59 // pred_check_branch
          %453 = sbr.rel (%p451) target = $region64
        $region63: #{tpu_custom_call.1} parent=59 // pred_region
          %p454 = scmp.lt.s32.totalorder %s29, 1
          %s455 = scalar_select %p454, %s29, 1
          %s456 = smul.addr %s455, 2
          %s457 = smul.addr %s456, 8
          %s458 = scalar_lea.vmem %s2, %s457
        $region64: #{tpu_custom_call.1} parent=59 // pred_fallthru
          _
        // Predicated region
        $region65: #{tpu_custom_call.1} parent=59 // pred_check
          %p459 = pneg %p141
        $region66: #{tpu_custom_call.1} parent=59 // pred_check_branch
          %461 = sbr.rel (%p459) target = $region68
        $region67: #{tpu_custom_call.1} parent=59 // pred_region
          %p462 = scmp.lt.s32.totalorder %s29, 1
          %s463 = scalar_select %p462, %s29, 1
          %s464 = smul.addr %s463, 2
          %s465 = smul.addr %s464, 8
          %s466 = scalar_lea.vmem %s3, %s465
        $region68: #{tpu_custom_call.1} parent=59 // pred_fallthru
          _
        // Predicated region
        $region69: #{tpu_custom_call.1} parent=59 // pred_check
          %p467 = pneg %p167
        $region70: #{tpu_custom_call.1} parent=59 // pred_check_branch
          %469 = sbr.rel (%p467) target = $region72
        $region71: #{tpu_custom_call.1} parent=59 // pred_region
          %p470 = scmp.lt.s32.totalorder %s29, 1
          %s471 = scalar_select %p470, %s29, 1
          %s472 = smul.addr %s471, 2
          %s473 = smul.addr %s472, 8
          %s474 = scalar_lea.vmem %s4, %s473
        $region72: #{tpu_custom_call.1} parent=59 // pred_fallthru
          _
        // Predicated region
        $region73: #{tpu_custom_call.1} parent=59 // pred_check
          %p475 = pneg %p193
        $region74: #{tpu_custom_call.1} parent=59 // pred_check_branch
          %477 = sbr.rel (%p475) target = $region76
        $region75: #{tpu_custom_call.1} parent=59 // pred_region
          %p478 = scmp.lt.s32.totalorder %s29, 1
          %s479 = scalar_select %p478, %s29, 1
          %s480 = smul.addr %s479, 2
          %s481 = smul.addr %s480, 8
          %s482 = scalar_lea.vmem %s5, %s481
        $region76: #{tpu_custom_call.1} parent=59 // pred_fallthru
          _
      $region60: #{tpu_custom_call.1} parent=5 // pred_fallthru
        _
    $region6: #{tpu_custom_call.1} parent=1 // loop_footer
      %s22 = sadd.s32 1, %s18
    $region7: #{tpu_custom_call.1} parent=1 // loop_footer_branch
      %17 = sbr.rel target = $region3
    $region8: #{tpu_custom_call.1} parent=1 // loop_exit
      _
    %483 = vsyncpa [#allocation3], 1
    %s484 = scalar_lea.sflag [#allocation3], 1
    %485 = vsyncpa %s484, 1
    %486 = vsyncpa [#allocation5], 1
    %s487 = scalar_lea.sflag [#allocation5], 1
    %488 = vsyncpa %s487, 1

</llo_original>
